<compile_context>
chip_gen: v5e
topology: v5e:2x2
jax: 0.10.0
libtpu: 0.0.40
codegen_flags: <defaults>
</compile_context>

<pallas_src>
import functools

import jax
import jax.numpy as jnp
from jax.experimental import pallas as pl
from jax.experimental.pallas import tpu as pltpu


def _round_up(x, m):
    return ((x + m - 1) // m) * m


# ---------------------------------------------------------------------------
# Fused kernel: per time-chunk -> input projection (parallel matmul),
# serial recurrence (unrolled), readout (parallel matmul).
# ---------------------------------------------------------------------------
def _btier_kernel(x_ref, h0_ref, win_ref, whh_ref, whb_ref, bh_ref, bb_ref,
                  out_ref, hout_ref,
                  h_scr, pre_scr, hs_scr,
                  *, t_blk, seq_len, mm_dtype):
    c = pl.program_id(0)
    bp = x_ref.shape[0]
    i_dim = x_ref.shape[3]
    h_pad = whh_ref.shape[0]

    # Initialize the VMEM-carried hidden state on the first chunk only.
    @pl.when(c == 0)
    def _():
        h_scr[...] = h0_ref[...]

    # ---- (1) Input projection for the whole chunk (off the serial chain) ----
    #      pre[b, t] = nh @ W_nh + nr @ W_nr + nt @ W_nt + bh
    xb = x_ref[...]                                            # (Bp, 3, T, i)
    acc = jnp.broadcast_to(bh_ref[...],
                           (bp * t_blk, h_pad)).astype(jnp.float32)
    for s in range(3):                                         # nh, nr, nt
        xs = xb[:, s, :, :].reshape(bp * t_blk, i_dim)         # free reshape
        acc = acc + jnp.dot(xs, win_ref[s],
                            preferred_element_type=jnp.float32)
    pre_scr[...] = acc.reshape(bp, t_blk, h_pad)

    # ---- (2) Serial recurrence over the chunk (the only sequential part) ----
    whh = whh_ref[...]                                         # hoisted, resident
    h = h_scr[...]                                             # (Bp, h_pad) f32
    for t in range(t_blk):                                     # fully unrolled
        h_new = jnp.tanh(pre_scr[:, t, :] +
                         jnp.dot(h.astype(mm_dtype), whh,
                                 preferred_element_type=jnp.float32))
        if seq_len % t_blk != 0:
            # Freeze h on padded time steps so the final hidden is exact.
            h_new = jnp.where(c * t_blk + t < seq_len, h_new, h)
        h = h_new
        hs_scr[:, t, :] = h
    h_scr[...] = h
    hout_ref[...] = h                                          # last chunk wins

    # ---- (3) Fused readout for the whole chunk: b_t = h_t @ W_hb + bb -------
    hs = hs_scr[...].reshape(bp * t_blk, h_pad)
    out = jnp.dot(hs.astype(mm_dtype), whb_ref[...],
                  preferred_element_type=jnp.float32) + bb_ref[...]
    out_ref[...] = out.reshape(bp, t_blk, out_ref.shape[2]).astype(out_ref.dtype)


# ---------------------------------------------------------------------------
# Wrapper: B_Tier.forward
# ---------------------------------------------------------------------------
def b_tier_forward(x, params, hidden=None, *, matmul_dtype=jnp.float32,
                   t_blk=None):
    """x: (B, 3, S, i_dim) -> (outputs (B, S, b_dim), h (B, h_dim))."""
    B, three, S, i_dim = x.shape
    assert three == 3
    w_nh, w_nr, w_nt, w_hh, bh, w_hb, bb = params
    h_dim = w_hh.shape[0]
    b_dim = w_hb.shape[1]
    mm = jnp.dtype(matmul_dtype)

    # Sublane/lane-dense padding.  bf16 packs (16, 128) per vreg -> 16 sublanes.
    sub = 16 if mm.itemsize < 4 else 8
    Bp = _round_up(B, sub)
    h_pad = _round_up(h_dim, 128)
    b_pad = _round_up(b_dim, 128)

    if t_blk is None:
        t_blk = min(_round_up(S, sub), 64)
    t_blk = max(sub, _round_up(t_blk, sub))
    S_pad = _round_up(S, t_blk)
    n_chunks = S_pad // t_blk

    # NOTE: padded batch rows / padded time steps carry bias-only garbage
    # activations through tanh; they are masked (time) and sliced off (batch).
    x_p = x.astype(mm)
    if (Bp, S_pad) != (B, S):
        x_p = jnp.pad(x_p, ((0, Bp - B), (0, 0), (0, S_pad - S), (0, 0)))

    if hidden is None:
        h0 = jnp.zeros((Bp, h_pad), jnp.float32)
    else:
        h0 = jnp.pad(hidden.astype(jnp.float32),
                     ((0, Bp - B), (0, h_pad - h_dim)))

    def pad2(w, r, c_):
        return jnp.pad(w, ((0, r - w.shape[0]), (0, c_ - w.shape[1])))

    w_in = jnp.stack([pad2(w_nh, i_dim, h_pad),
                      pad2(w_nr, i_dim, h_pad),
                      pad2(w_nt, i_dim, h_pad)]).astype(mm)       # (3, i, h_pad)
    whh_p = pad2(w_hh, h_pad, h_pad).astype(mm)                   # (h_pad, h_pad)
    whb_p = pad2(w_hb, h_pad, b_pad).astype(mm)                   # (h_pad, b_pad)
    bh_p = pad2(bh.reshape(1, h_dim), 1, h_pad).astype(jnp.float32)
    bb_p = pad2(bb.reshape(1, b_dim), 1, b_pad).astype(jnp.float32)

    # VMEM budget: weights resident + double-buffered streamed blocks + scratch.
    # Capped at 48 MiB so there is headroom even on v7x (64 MiB physical VMEM).
    itm = mm.itemsize
    resident = ((w_in.size + whh_p.size + whb_p.size) * itm
                + (h_pad + b_pad) * 4
                + 2 * (Bp * 3 * t_blk * i_dim * itm)              # x block x2
                + 2 * (Bp * t_blk * b_pad * 4)                    # out block x2
                + 3 * Bp * h_pad * 4                              # h0 + hout + h_scr
                + 2 * Bp * t_blk * h_pad * 4)                     # pre_scr + hs_scr
    vmem_limit = int(min(max(2 * resident, 32 * 2**20), 48 * 2**20))

    kernel = functools.partial(_btier_kernel, t_blk=t_blk, seq_len=S,
                               mm_dtype=mm)

    out_full, h_full = pl.pallas_call(
        kernel,
        out_shape=(jax.ShapeDtypeStruct((Bp, S_pad, b_pad), jnp.float32),
                   jax.ShapeDtypeStruct((Bp, h_pad), jnp.float32)),
        grid=(n_chunks,),
        in_specs=[
            pl.BlockSpec((Bp, 3, t_blk, i_dim), lambda c: (0, 0, c, 0)),  # x chunk
            pl.BlockSpec((Bp, h_pad), lambda c: (0, 0)),                  # h0
            pl.BlockSpec((3, i_dim, h_pad), lambda c: (0, 0, 0)),         # W_in
            pl.BlockSpec((h_pad, h_pad), lambda c: (0, 0)),               # W_hh
            pl.BlockSpec((h_pad, b_pad), lambda c: (0, 0)),               # W_hb
            pl.BlockSpec((1, h_pad), lambda c: (0, 0)),                   # bh
            pl.BlockSpec((1, b_pad), lambda c: (0, 0)),                   # bb
        ],
        out_specs=(
            pl.BlockSpec((Bp, t_blk, b_pad), lambda c: (0, c, 0)),        # outputs
            pl.BlockSpec((Bp, h_pad), lambda c: (0, 0)),                  # final h
        ),
        scratch_shapes=[
            pltpu.VMEM((Bp, h_pad), jnp.float32),           # hidden carry
            pltpu.VMEM((Bp, t_blk, h_pad), jnp.float32),    # chunk pre-activations
            pltpu.VMEM((Bp, t_blk, h_pad), jnp.float32),    # chunk hidden states
        ],
        compiler_params=pltpu.CompilerParams(
            dimension_semantics=("arbitrary",),             # recurrent -> sequential
            vmem_limit_bytes=vmem_limit),
    )(x_p, h0, w_in, whh_p, whb_p, bh_p, bb_p)

    return out_full[:B, :S, :b_dim], h_full[:B, :h_dim]


# ---------------------------------------------------------------------------
# Pure-JAX reference (same stand-in cell) for a correctness check.
# ---------------------------------------------------------------------------
def b_tier_reference(x, params, hidden=None):
    B, _, S, _ = x.shape
    w_nh, w_nr, w_nt, w_hh, bh, w_hb, bb = params
    h = (jnp.zeros((B, w_hh.shape[0]), jnp.float32) if hidden is None
         else hidden.astype(jnp.float32))
    nh = jnp.swapaxes(x[:, 0], 0, 1)   # (S, B, i)
    nr = jnp.swapaxes(x[:, 1], 0, 1)
    nt = jnp.swapaxes(x[:, 2], 0, 1)

    def step(h_prev, xs):
        xh, xr, xt = xs
        h_new = jnp.tanh(xh @ w_nh + xr @ w_nr + xt @ w_nt + h_prev @ w_hh + bh)
        b = h_new @ w_hb + bb
        return h_new, b

    h_last, bs = jax.lax.scan(step, h, (nh, nr, nt))
    return jnp.swapaxes(bs, 0, 1), h_last


def init_params(key, i_dim, h_dim, b_dim):
    ks = jax.random.split(key, 7)
    s_i = 1.0 / jnp.sqrt(jnp.float32(i_dim))
    s_h = 1.0 / jnp.sqrt(jnp.float32(h_dim))
    w_nh = jax.random.uniform(ks[0], (i_dim, h_dim), jnp.float32, -s_i, s_i)
    w_nr = jax.random.uniform(ks[1], (i_dim, h_dim), jnp.float32, -s_i, s_i)
    w_nt = jax.random.uniform(ks[2], (i_dim, h_dim), jnp.float32, -s_i, s_i)
    w_hh = jax.random.uniform(ks[3], (h_dim, h_dim), jnp.float32, -s_h, s_h)
    bh   = jax.random.uniform(ks[4], (1, h_dim), jnp.float32, -s_h, s_h)
    w_hb = jax.random.uniform(ks[5], (h_dim, b_dim), jnp.float32, -s_h, s_h)
    bb   = jax.random.uniform(ks[6], (1, b_dim), jnp.float32, -s_h, s_h)
    return (w_nh, w_nr, w_nt, w_hh, bh, w_hb, bb)


if __name__ == "__main__":
    i_dim, h_dim, b_dim = 16, 32, 16
    batch, seq = 4, 8

    key = jax.random.PRNGKey(0)
    kx, kp = jax.random.split(key)
    x = jax.random.normal(kx, (batch, 3, seq, i_dim), jnp.float32)
    params = init_params(kp, i_dim, h_dim, b_dim)

    outputs, h = jax.jit(b_tier_forward)(x, params)
    jax.block_until_ready((outputs, h))

    assert outputs.shape == (batch, seq, b_dim)
    assert h.shape == (batch, h_dim)

    # Correctness check against the pure-JAX reference (tolerance accommodates
    # MXU default-precision reassociation of the fused per-chunk matmuls).
    ref_out, ref_h = b_tier_reference(x, params)
    err_out = float(jnp.max(jnp.abs(outputs - ref_out)))
    err_h = float(jnp.max(jnp.abs(h - ref_h)))
    assert err_out < 2e-2 and err_h < 2e-2, (err_out, err_h)

    print("KERNEL_OK")
</pallas_src>

<mosaic_0001>
module attributes {stable_mosaic.version = 11 : i64} {
  func.func @_btier_kernel(%arg0: i32, %arg1: memref<8x3x8x16xf32, #tpu.memory_space<vmem>>, %arg2: memref<8x128xf32, #tpu.memory_space<vmem>>, %arg3: memref<3x16x128xf32, #tpu.memory_space<vmem>>, %arg4: memref<128x128xf32, #tpu.memory_space<vmem>>, %arg5: memref<128x128xf32, #tpu.memory_space<vmem>>, %arg6: memref<1x128xf32, #tpu.memory_space<vmem>>, %arg7: memref<1x128xf32, #tpu.memory_space<vmem>>, %arg8: memref<8x8x128xf32, #tpu.memory_space<vmem>>, %arg9: memref<8x128xf32, #tpu.memory_space<vmem>>, %arg10: memref<8x128xf32, #tpu.memory_space<vmem>>, %arg11: memref<8x8x128xf32, #tpu.memory_space<vmem>>, %arg12: memref<8x8x128xf32, #tpu.memory_space<vmem>>) attributes {dimension_semantics = [#tpu.dimension_semantics<arbitrary>], iteration_bounds = array<i64: 1>, scalar_prefetch = 0 : i64, scratch_operands = 3 : i64, tpu.core_type = #tpu.core_type<tc>, window_params = [{transform_indices = @transform_0, window_bounds = array<i64: 8, 3, 8, 16>}, {pipeline_mode = #tpu.pipeline_mode<synchronous>, transform_indices = @transform_1, window_bounds = array<i64: 8, 128>}, {pipeline_mode = #tpu.pipeline_mode<synchronous>, transform_indices = @transform_2, window_bounds = array<i64: 3, 16, 128>}, {pipeline_mode = #tpu.pipeline_mode<synchronous>, transform_indices = @transform_3, window_bounds = array<i64: 128, 128>}, {pipeline_mode = #tpu.pipeline_mode<synchronous>, transform_indices = @transform_4, window_bounds = array<i64: 128, 128>}, {pipeline_mode = #tpu.pipeline_mode<synchronous>, transform_indices = @transform_5, window_bounds = array<i64: 1, 128>}, {pipeline_mode = #tpu.pipeline_mode<synchronous>, transform_indices = @transform_6, window_bounds = array<i64: 1, 128>}, {transform_indices = @transform_7, window_bounds = array<i64: 8, 8, 128>}, {pipeline_mode = #tpu.pipeline_mode<synchronous>, transform_indices = @transform_8, window_bounds = array<i64: 8, 128>}]} {
    %c0_i32 = arith.constant 0 : i32
    %0 = arith.cmpi eq, %arg0, %c0_i32 : i32
    %1 = arith.extui %0 : i1 to i32
    %c0_i32_0 = arith.constant 0 : i32
    %2 = arith.cmpi ne, %1, %c0_i32_0 : i32
    scf.if %2 {
      %c0_88 = arith.constant 0 : index
      %c0_89 = arith.constant 0 : index
      %107 = vector.load %arg2[%c0_88, %c0_89] : memref<8x128xf32, #tpu.memory_space<vmem>>, vector<8x128xf32>
      %c0_90 = arith.constant 0 : index
      %c0_91 = arith.constant 0 : index
      %108 = vector.load %arg10[%c0_90, %c0_91] : memref<8x128xf32, #tpu.memory_space<vmem>>, vector<8x128xf32>
      tpu.vector_store %arg10[%c0_90, %c0_91], %107 {strides = array<i32>} : memref<8x128xf32, #tpu.memory_space<vmem>>, vector<8x128xf32>,
    } else {
    }
    %c0 = arith.constant 0 : index
    %c0_1 = arith.constant 0 : index
    %c0_2 = arith.constant 0 : index
    %c0_3 = arith.constant 0 : index
    %3 = vector.load %arg1[%c0, %c0_1, %c0_2, %c0_3] : memref<8x3x8x16xf32, #tpu.memory_space<vmem>>, vector<8x3x8x16xf32>
    %c0_4 = arith.constant 0 : index
    %c0_5 = arith.constant 0 : index
    %4 = vector.load %arg6[%c0_4, %c0_5] : memref<1x128xf32, #tpu.memory_space<vmem>>, vector<1x128xf32>
    %5 = vector.shape_cast %4 : vector<1x128xf32> to vector<1x128xf32>
    %6 = vector.broadcast %5 : vector<1x128xf32> to vector<64x128xf32>
    %7 = vector.extract_strided_slice %3 {offsets = [0, 0, 0, 0], sizes = [8, 1, 8, 16], strides = [1, 1, 1, 1]} : vector<8x3x8x16xf32> to vector<8x1x8x16xf32>
    %8 = vector.shape_cast %7 : vector<8x1x8x16xf32> to vector<8x8x16xf32>
    %9 = vector.shape_cast %8 : vector<8x8x16xf32> to vector<64x16xf32>
    %c0_6 = arith.constant 0 : index
    %c0_7 = arith.constant 0 : index
    %c0_8 = arith.constant 0 : index
    %10 = vector.load %arg3[%c0_6, %c0_7, %c0_8] : memref<3x16x128xf32, #tpu.memory_space<vmem>>, vector<1x16x128xf32>
    %11 = vector.shape_cast %10 : vector<1x16x128xf32> to vector<16x128xf32>
    %cst = arith.constant dense<0.000000e+00> : vector<64x128xf32>
    %12 = tpu.matmul %9, %11, %cst {dimension_numbers = #tpu.dot_dimension_numbers<[1], [0], [0], [1], [0, 0, 1, 1], [], []>} : vector<64x16xf32>, vector<16x128xf32>, vector<64x128xf32> -> vector<64x128xf32>
    %13 = arith.addf %6, %12 : vector<64x128xf32>
    %14 = vector.extract_strided_slice %3 {offsets = [0, 1, 0, 0], sizes = [8, 1, 8, 16], strides = [1, 1, 1, 1]} : vector<8x3x8x16xf32> to vector<8x1x8x16xf32>
    %15 = vector.shape_cast %14 : vector<8x1x8x16xf32> to vector<8x8x16xf32>
    %16 = vector.shape_cast %15 : vector<8x8x16xf32> to vector<64x16xf32>
    %c1 = arith.constant 1 : index
    %c0_9 = arith.constant 0 : index
    %c0_10 = arith.constant 0 : index
    %17 = vector.load %arg3[%c1, %c0_9, %c0_10] : memref<3x16x128xf32, #tpu.memory_space<vmem>>, vector<1x16x128xf32>
    %18 = vector.shape_cast %17 : vector<1x16x128xf32> to vector<16x128xf32>
    %cst_11 = arith.constant dense<0.000000e+00> : vector<64x128xf32>
    %19 = tpu.matmul %16, %18, %cst_11 {dimension_numbers = #tpu.dot_dimension_numbers<[1], [0], [0], [1], [0, 0, 1, 1], [], []>} : vector<64x16xf32>, vector<16x128xf32>, vector<64x128xf32> -> vector<64x128xf32>
    %20 = arith.addf %13, %19 : vector<64x128xf32>
    %21 = vector.extract_strided_slice %3 {offsets = [0, 2, 0, 0], sizes = [8, 1, 8, 16], strides = [1, 1, 1, 1]} : vector<8x3x8x16xf32> to vector<8x1x8x16xf32>
    %22 = vector.shape_cast %21 : vector<8x1x8x16xf32> to vector<8x8x16xf32>
    %23 = vector.shape_cast %22 : vector<8x8x16xf32> to vector<64x16xf32>
    %c2 = arith.constant 2 : index
    %c0_12 = arith.constant 0 : index
    %c0_13 = arith.constant 0 : index
    %24 = vector.load %arg3[%c2, %c0_12, %c0_13] : memref<3x16x128xf32, #tpu.memory_space<vmem>>, vector<1x16x128xf32>
    %25 = vector.shape_cast %24 : vector<1x16x128xf32> to vector<16x128xf32>
    %cst_14 = arith.constant dense<0.000000e+00> : vector<64x128xf32>
    %26 = tpu.matmul %23, %25, %cst_14 {dimension_numbers = #tpu.dot_dimension_numbers<[1], [0], [0], [1], [0, 0, 1, 1], [], []>} : vector<64x16xf32>, vector<16x128xf32>, vector<64x128xf32> -> vector<64x128xf32>
    %27 = arith.addf %20, %26 : vector<64x128xf32>
    %28 = vector.shape_cast %27 : vector<64x128xf32> to vector<8x8x128xf32>
    %c0_15 = arith.constant 0 : index
    %c0_16 = arith.constant 0 : index
    %c0_17 = arith.constant 0 : index
    %29 = vector.load %arg11[%c0_15, %c0_16, %c0_17] : memref<8x8x128xf32, #tpu.memory_space<vmem>>, vector<8x8x128xf32>
    tpu.vector_store %arg11[%c0_15, %c0_16, %c0_17], %28 {strides = array<i32>} : memref<8x8x128xf32, #tpu.memory_space<vmem>>, vector<8x8x128xf32>,
    %c0_18 = arith.constant 0 : index
    %c0_19 = arith.constant 0 : index
    %30 = vector.load %arg4[%c0_18, %c0_19] : memref<128x128xf32, #tpu.memory_space<vmem>>, vector<128x128xf32>
    %c0_20 = arith.constant 0 : index
    %c0_21 = arith.constant 0 : index
    %31 = vector.load %arg10[%c0_20, %c0_21] : memref<8x128xf32, #tpu.memory_space<vmem>>, vector<8x128xf32>
    %c0_22 = arith.constant 0 : index
    %c0_23 = arith.constant 0 : index
    %c0_24 = arith.constant 0 : index
    %32 = vector.load %arg11[%c0_22, %c0_23, %c0_24] : memref<8x8x128xf32, #tpu.memory_space<vmem>>, vector<8x1x128xf32>
    %33 = vector.shape_cast %32 : vector<8x1x128xf32> to vector<8x128xf32>
    %cst_25 = arith.constant dense<0.000000e+00> : vector<8x128xf32>
    %34 = tpu.matmul %31, %30, %cst_25 {dimension_numbers = #tpu.dot_dimension_numbers<[1], [0], [0], [1], [0, 0, 1, 1], [], []>} : vector<8x128xf32>, vector<128x128xf32>, vector<8x128xf32> -> vector<8x128xf32>
    %35 = arith.addf %33, %34 : vector<8x128xf32>
    %36 = math.tanh %35 : vector<8x128xf32>
    %c0_26 = arith.constant 0 : index
    %c0_27 = arith.constant 0 : index
    %c0_28 = arith.constant 0 : index
    %37 = vector.load %arg12[%c0_26, %c0_27, %c0_28] : memref<8x8x128xf32, #tpu.memory_space<vmem>>, vector<8x1x128xf32>
    %38 = vector.shape_cast %37 : vector<8x1x128xf32> to vector<8x128xf32>
    %39 = vector.shape_cast %36 : vector<8x128xf32> to vector<8x1x128xf32>
    tpu.vector_store %arg12[%c0_26, %c0_27, %c0_28], %39 {strides = array<i32>} : memref<8x8x128xf32, #tpu.memory_space<vmem>>, vector<8x1x128xf32>,
    %c0_29 = arith.constant 0 : index
    %c1_30 = arith.constant 1 : index
    %c0_31 = arith.constant 0 : index
    %40 = vector.load %arg11[%c0_29, %c1_30, %c0_31] : memref<8x8x128xf32, #tpu.memory_space<vmem>>, vector<8x1x128xf32>
    %41 = vector.shape_cast %40 : vector<8x1x128xf32> to vector<8x128xf32>
    %cst_32 = arith.constant dense<0.000000e+00> : vector<8x128xf32>
    %42 = tpu.matmul %36, %30, %cst_32 {dimension_numbers = #tpu.dot_dimension_numbers<[1], [0], [0], [1], [0, 0, 1, 1], [], []>} : vector<8x128xf32>, vector<128x128xf32>, vector<8x128xf32> -> vector<8x128xf32>
    %43 = arith.addf %41, %42 : vector<8x128xf32>
    %44 = math.tanh %43 : vector<8x128xf32>
    %c0_33 = arith.constant 0 : index
    %c1_34 = arith.constant 1 : index
    %c0_35 = arith.constant 0 : index
    %45 = vector.load %arg12[%c0_33, %c1_34, %c0_35] : memref<8x8x128xf32, #tpu.memory_space<vmem>>, vector<8x1x128xf32>
    %46 = vector.shape_cast %45 : vector<8x1x128xf32> to vector<8x128xf32>
    %47 = vector.shape_cast %44 : vector<8x128xf32> to vector<8x1x128xf32>
    tpu.vector_store %arg12[%c0_33, %c1_34, %c0_35], %47 {strides = array<i32>} : memref<8x8x128xf32, #tpu.memory_space<vmem>>, vector<8x1x128xf32>,
    %c0_36 = arith.constant 0 : index
    %c2_37 = arith.constant 2 : index
    %c0_38 = arith.constant 0 : index
    %48 = vector.load %arg11[%c0_36, %c2_37, %c0_38] : memref<8x8x128xf32, #tpu.memory_space<vmem>>, vector<8x1x128xf32>
    %49 = vector.shape_cast %48 : vector<8x1x128xf32> to vector<8x128xf32>
    %cst_39 = arith.constant dense<0.000000e+00> : vector<8x128xf32>
    %50 = tpu.matmul %44, %30, %cst_39 {dimension_numbers = #tpu.dot_dimension_numbers<[1], [0], [0], [1], [0, 0, 1, 1], [], []>} : vector<8x128xf32>, vector<128x128xf32>, vector<8x128xf32> -> vector<8x128xf32>
    %51 = arith.addf %49, %50 : vector<8x128xf32>
    %52 = math.tanh %51 : vector<8x128xf32>
    %c0_40 = arith.constant 0 : index
    %c2_41 = arith.constant 2 : index
    %c0_42 = arith.constant 0 : index
    %53 = vector.load %arg12[%c0_40, %c2_41, %c0_42] : memref<8x8x128xf32, #tpu.memory_space<vmem>>, vector<8x1x128xf32>
    %54 = vector.shape_cast %53 : vector<8x1x128xf32> to vector<8x128xf32>
    %55 = vector.shape_cast %52 : vector<8x128xf32> to vector<8x1x128xf32>
    tpu.vector_store %arg12[%c0_40, %c2_41, %c0_42], %55 {strides = array<i32>} : memref<8x8x128xf32, #tpu.memory_space<vmem>>, vector<8x1x128xf32>,
    %c0_43 = arith.constant 0 : index
    %c3 = arith.constant 3 : index
    %c0_44 = arith.constant 0 : index
    %56 = vector.load %arg11[%c0_43, %c3, %c0_44] : memref<8x8x128xf32, #tpu.memory_space<vmem>>, vector<8x1x128xf32>
    %57 = vector.shape_cast %56 : vector<8x1x128xf32> to vector<8x128xf32>
    %cst_45 = arith.constant dense<0.000000e+00> : vector<8x128xf32>
    %58 = tpu.matmul %52, %30, %cst_45 {dimension_numbers = #tpu.dot_dimension_numbers<[1], [0], [0], [1], [0, 0, 1, 1], [], []>} : vector<8x128xf32>, vector<128x128xf32>, vector<8x128xf32> -> vector<8x128xf32>
    %59 = arith.addf %57, %58 : vector<8x128xf32>
    %60 = math.tanh %59 : vector<8x128xf32>
    %c0_46 = arith.constant 0 : index
    %c3_47 = arith.constant 3 : index
    %c0_48 = arith.constant 0 : index
    %61 = vector.load %arg12[%c0_46, %c3_47, %c0_48] : memref<8x8x128xf32, #tpu.memory_space<vmem>>, vector<8x1x128xf32>
    %62 = vector.shape_cast %61 : vector<8x1x128xf32> to vector<8x128xf32>
    %63 = vector.shape_cast %60 : vector<8x128xf32> to vector<8x1x128xf32>
    tpu.vector_store %arg12[%c0_46, %c3_47, %c0_48], %63 {strides = array<i32>} : memref<8x8x128xf32, #tpu.memory_space<vmem>>, vector<8x1x128xf32>,
    %c0_49 = arith.constant 0 : index
    %c4 = arith.constant 4 : index
    %c0_50 = arith.constant 0 : index
    %64 = vector.load %arg11[%c0_49, %c4, %c0_50] : memref<8x8x128xf32, #tpu.memory_space<vmem>>, vector<8x1x128xf32>
    %65 = vector.shape_cast %64 : vector<8x1x128xf32> to vector<8x128xf32>
    %cst_51 = arith.constant dense<0.000000e+00> : vector<8x128xf32>
    %66 = tpu.matmul %60, %30, %cst_51 {dimension_numbers = #tpu.dot_dimension_numbers<[1], [0], [0], [1], [0, 0, 1, 1], [], []>} : vector<8x128xf32>, vector<128x128xf32>, vector<8x128xf32> -> vector<8x128xf32>
    %67 = arith.addf %65, %66 : vector<8x128xf32>
    %68 = math.tanh %67 : vector<8x128xf32>
    %c0_52 = arith.constant 0 : index
    %c4_53 = arith.constant 4 : index
    %c0_54 = arith.constant 0 : index
    %69 = vector.load %arg12[%c0_52, %c4_53, %c0_54] : memref<8x8x128xf32, #tpu.memory_space<vmem>>, vector<8x1x128xf32>
    %70 = vector.shape_cast %69 : vector<8x1x128xf32> to vector<8x128xf32>
    %71 = vector.shape_cast %68 : vector<8x128xf32> to vector<8x1x128xf32>
    tpu.vector_store %arg12[%c0_52, %c4_53, %c0_54], %71 {strides = array<i32>} : memref<8x8x128xf32, #tpu.memory_space<vmem>>, vector<8x1x128xf32>,
    %c0_55 = arith.constant 0 : index
    %c5 = arith.constant 5 : index
    %c0_56 = arith.constant 0 : index
    %72 = vector.load %arg11[%c0_55, %c5, %c0_56] : memref<8x8x128xf32, #tpu.memory_space<vmem>>, vector<8x1x128xf32>
    %73 = vector.shape_cast %72 : vector<8x1x128xf32> to vector<8x128xf32>
    %cst_57 = arith.constant dense<0.000000e+00> : vector<8x128xf32>
    %74 = tpu.matmul %68, %30, %cst_57 {dimension_numbers = #tpu.dot_dimension_numbers<[1], [0], [0], [1], [0, 0, 1, 1], [], []>} : vector<8x128xf32>, vector<128x128xf32>, vector<8x128xf32> -> vector<8x128xf32>
    %75 = arith.addf %73, %74 : vector<8x128xf32>
    %76 = math.tanh %75 : vector<8x128xf32>
    %c0_58 = arith.constant 0 : index
    %c5_59 = arith.constant 5 : index
    %c0_60 = arith.constant 0 : index
    %77 = vector.load %arg12[%c0_58, %c5_59, %c0_60] : memref<8x8x128xf32, #tpu.memory_space<vmem>>, vector<8x1x128xf32>
    %78 = vector.shape_cast %77 : vector<8x1x128xf32> to vector<8x128xf32>
    %79 = vector.shape_cast %76 : vector<8x128xf32> to vector<8x1x128xf32>
    tpu.vector_store %arg12[%c0_58, %c5_59, %c0_60], %79 {strides = array<i32>} : memref<8x8x128xf32, #tpu.memory_space<vmem>>, vector<8x1x128xf32>,
    %c0_61 = arith.constant 0 : index
    %c6 = arith.constant 6 : index
    %c0_62 = arith.constant 0 : index
    %80 = vector.load %arg11[%c0_61, %c6, %c0_62] : memref<8x8x128xf32, #tpu.memory_space<vmem>>, vector<8x1x128xf32>
    %81 = vector.shape_cast %80 : vector<8x1x128xf32> to vector<8x128xf32>
    %cst_63 = arith.constant dense<0.000000e+00> : vector<8x128xf32>
    %82 = tpu.matmul %76, %30, %cst_63 {dimension_numbers = #tpu.dot_dimension_numbers<[1], [0], [0], [1], [0, 0, 1, 1], [], []>} : vector<8x128xf32>, vector<128x128xf32>, vector<8x128xf32> -> vector<8x128xf32>
    %83 = arith.addf %81, %82 : vector<8x128xf32>
    %84 = math.tanh %83 : vector<8x128xf32>
    %c0_64 = arith.constant 0 : index
    %c6_65 = arith.constant 6 : index
    %c0_66 = arith.constant 0 : index
    %85 = vector.load %arg12[%c0_64, %c6_65, %c0_66] : memref<8x8x128xf32, #tpu.memory_space<vmem>>, vector<8x1x128xf32>
    %86 = vector.shape_cast %85 : vector<8x1x128xf32> to vector<8x128xf32>
    %87 = vector.shape_cast %84 : vector<8x128xf32> to vector<8x1x128xf32>
    tpu.vector_store %arg12[%c0_64, %c6_65, %c0_66], %87 {strides = array<i32>} : memref<8x8x128xf32, #tpu.memory_space<vmem>>, vector<8x1x128xf32>,
    %c0_67 = arith.constant 0 : index
    %c7 = arith.constant 7 : index
    %c0_68 = arith.constant 0 : index
    %88 = vector.load %arg11[%c0_67, %c7, %c0_68] : memref<8x8x128xf32, #tpu.memory_space<vmem>>, vector<8x1x128xf32>
    %89 = vector.shape_cast %88 : vector<8x1x128xf32> to vector<8x128xf32>
    %cst_69 = arith.constant dense<0.000000e+00> : vector<8x128xf32>
    %90 = tpu.matmul %84, %30, %cst_69 {dimension_numbers = #tpu.dot_dimension_numbers<[1], [0], [0], [1], [0, 0, 1, 1], [], []>} : vector<8x128xf32>, vector<128x128xf32>, vector<8x128xf32> -> vector<8x128xf32>
    %91 = arith.addf %89, %90 : vector<8x128xf32>
    %92 = math.tanh %91 : vector<8x128xf32>
    %c0_70 = arith.constant 0 : index
    %c7_71 = arith.constant 7 : index
    %c0_72 = arith.constant 0 : index
    %93 = vector.load %arg12[%c0_70, %c7_71, %c0_72] : memref<8x8x128xf32, #tpu.memory_space<vmem>>, vector<8x1x128xf32>
    %94 = vector.shape_cast %93 : vector<8x1x128xf32> to vector<8x128xf32>
    %95 = vector.shape_cast %92 : vector<8x128xf32> to vector<8x1x128xf32>
    tpu.vector_store %arg12[%c0_70, %c7_71, %c0_72], %95 {strides = array<i32>} : memref<8x8x128xf32, #tpu.memory_space<vmem>>, vector<8x1x128xf32>,
    %c0_73 = arith.constant 0 : index
    %c0_74 = arith.constant 0 : index
    %96 = vector.load %arg10[%c0_73, %c0_74] : memref<8x128xf32, #tpu.memory_space<vmem>>, vector<8x128xf32>
    tpu.vector_store %arg10[%c0_73, %c0_74], %92 {strides = array<i32>} : memref<8x128xf32, #tpu.memory_space<vmem>>, vector<8x128xf32>,
    %c0_75 = arith.constant 0 : index
    %c0_76 = arith.constant 0 : index
    %97 = vector.load %arg9[%c0_75, %c0_76] : memref<8x128xf32, #tpu.memory_space<vmem>>, vector<8x128xf32>
    tpu.vector_store %arg9[%c0_75, %c0_76], %92 {strides = array<i32>} : memref<8x128xf32, #tpu.memory_space<vmem>>, vector<8x128xf32>,
    %c0_77 = arith.constant 0 : index
    %c0_78 = arith.constant 0 : index
    %c0_79 = arith.constant 0 : index
    %98 = vector.load %arg12[%c0_77, %c0_78, %c0_79] : memref<8x8x128xf32, #tpu.memory_space<vmem>>, vector<8x8x128xf32>
    %99 = vector.shape_cast %98 : vector<8x8x128xf32> to vector<64x128xf32>
    %c0_80 = arith.constant 0 : index
    %c0_81 = arith.constant 0 : index
    %100 = vector.load %arg5[%c0_80, %c0_81] : memref<128x128xf32, #tpu.memory_space<vmem>>, vector<128x128xf32>
    %cst_82 = arith.constant dense<0.000000e+00> : vector<64x128xf32>
    %101 = tpu.matmul %99, %100, %cst_82 {dimension_numbers = #tpu.dot_dimension_numbers<[1], [0], [0], [1], [0, 0, 1, 1], [], []>} : vector<64x128xf32>, vector<128x128xf32>, vector<64x128xf32> -> vector<64x128xf32>
    %c0_83 = arith.constant 0 : index
    %c0_84 = arith.constant 0 : index
    %102 = vector.load %arg7[%c0_83, %c0_84] : memref<1x128xf32, #tpu.memory_space<vmem>>, vector<1x128xf32>
    %103 = vector.broadcast %102 : vector<1x128xf32> to vector<64x128xf32>
    %104 = arith.addf %101, %103 : vector<64x128xf32>
    %105 = vector.shape_cast %104 : vector<64x128xf32> to vector<8x8x128xf32>
    %c0_85 = arith.constant 0 : index
    %c0_86 = arith.constant 0 : index
    %c0_87 = arith.constant 0 : index
    %106 = vector.load %arg8[%c0_85, %c0_86, %c0_87] : memref<8x8x128xf32, #tpu.memory_space<vmem>>, vector<8x8x128xf32>
    tpu.vector_store %arg8[%c0_85, %c0_86, %c0_87], %105 {strides = array<i32>} : memref<8x8x128xf32, #tpu.memory_space<vmem>>, vector<8x8x128xf32>,
    return
  }
  func.func @transform_0(%arg0: i32) -> (i32, i32, i32, i32) {
    %c0_i32 = arith.constant 0 : i32
    %c0_i32_0 = arith.constant 0 : i32
    %c0_i32_1 = arith.constant 0 : i32
    %c0_i32_2 = arith.constant 0 : i32
    return %c0_i32, %c0_i32_0, %arg0, %c0_i32_1 : i32, i32, i32, i32
  }
  func.func @transform_1(%arg0: i32) -> (i32, i32) {
    %c0_i32 = arith.constant 0 : i32
    %c0_i32_0 = arith.constant 0 : i32
    %c0_i32_1 = arith.constant 0 : i32
    return %c0_i32, %c0_i32_0 : i32, i32
  }
  func.func @transform_2(%arg0: i32) -> (i32, i32, i32) {
    %c0_i32 = arith.constant 0 : i32
    %c0_i32_0 = arith.constant 0 : i32
    %c0_i32_1 = arith.constant 0 : i32
    %c0_i32_2 = arith.constant 0 : i32
    return %c0_i32, %c0_i32_0, %c0_i32_1 : i32, i32, i32
  }
  func.func @transform_3(%arg0: i32) -> (i32, i32) {
    %c0_i32 = arith.constant 0 : i32
    %c0_i32_0 = arith.constant 0 : i32
    %c0_i32_1 = arith.constant 0 : i32
    return %c0_i32, %c0_i32_0 : i32, i32
  }
  func.func @transform_4(%arg0: i32) -> (i32, i32) {
    %c0_i32 = arith.constant 0 : i32
    %c0_i32_0 = arith.constant 0 : i32
    %c0_i32_1 = arith.constant 0 : i32
    return %c0_i32, %c0_i32_0 : i32, i32
  }
  func.func @transform_5(%arg0: i32) -> (i32, i32) {
    %c0_i32 = arith.constant 0 : i32
    %c0_i32_0 = arith.constant 0 : i32
    %c0_i32_1 = arith.constant 0 : i32
    return %c0_i32, %c0_i32_0 : i32, i32
  }
  func.func @transform_6(%arg0: i32) -> (i32, i32) {
    %c0_i32 = arith.constant 0 : i32
    %c0_i32_0 = arith.constant 0 : i32
    %c0_i32_1 = arith.constant 0 : i32
    return %c0_i32, %c0_i32_0 : i32, i32
  }
  func.func @transform_7(%arg0: i32) -> (i32, i32, i32) {
    %c0_i32 = arith.constant 0 : i32
    %c0_i32_0 = arith.constant 0 : i32
    %c0_i32_1 = arith.constant 0 : i32
    return %c0_i32, %arg0, %c0_i32_0 : i32, i32, i32
  }
  func.func @transform_8(%arg0: i32) -> (i32, i32) {
    %c0_i32 = arith.constant 0 : i32
    %c0_i32_0 = arith.constant 0 : i32
    %c0_i32_1 = arith.constant 0 : i32
    return %c0_i32, %c0_i32_0 : i32, i32
  }
}

</mosaic_0001>

<llo_original>
// kernel: b_tier_forward.1
$region0: #{b_tier_forward.1}
  #allocation0 [shape = 'u32[]', space=smem, size = 0x4, offset = 0x4, fixed_abs, tag = 'smem constant byte address 0x4 - core index']
  #allocation1 [shape = 'u32[72,128]{1,0:T(1,128)}', space=vmem, size = 0x9000, scoped, tag = 'internal scratch']
  #allocation2 [shape = 'f32[8,128]{1,0:T(8,128)}', space=vmem, size = 0x1000, scoped, tag = 'scratch operand']
  #allocation3 [shape = 'f32[8,8,128]{2,1,0:T(8,128)}', space=vmem, size = 0x8000, scoped, tag = 'scratch operand']
  #allocation4 [shape = 'f32[8,8,128]{2,1,0:T(8,128)}', space=vmem, size = 0x8000, scoped, tag = 'scratch operand']
  %s0 = inlined_call_operand.vmem [shape: f32[8,3,8,16], index: 0, kind: input, shape index: {}]
  %s1 = inlined_call_operand.vmem [shape: f32[8,128], index: 1, kind: input, shape index: {}]
  %s2 = inlined_call_operand.vmem [shape: f32[3,16,128], index: 2, kind: input, shape index: {}]
  %s3 = inlined_call_operand.vmem [shape: f32[128,128], index: 3, kind: input, shape index: {}]
  %s4 = inlined_call_operand.vmem [shape: f32[128,128], index: 4, kind: input, shape index: {}]
  %s5 = inlined_call_operand.vmem [shape: f32[1,128], index: 5, kind: input, shape index: {}]
  %s6 = inlined_call_operand.vmem [shape: f32[1,128], index: 6, kind: input, shape index: {}]
  %s7 = inlined_call_operand.vmem [shape: f32[8,8,128], index: 7, kind: output, shape index: {0}]
  %s8 = inlined_call_operand.vmem [shape: f32[8,128], index: 8, kind: output, shape index: {1}]
  %9 = xla_tuple %s7, %s8
  %s10 = sld [smem:[#allocation0]]
  $region50: #{b_tier_forward.1} parent=0
    _
  %s12 = ssub.s32 1, %s10
  %s13 = scalar_select 0, %s12, %s10
  // Predicated region
  $region2: #{b_tier_forward.1} parent=0 // pred_check
    _
  $region3: #{b_tier_forward.1} parent=0 // pred_check_branch
    %15 = sbr.rel (0) target = $region5
  $region4: #{b_tier_forward.1} parent=0 // pred_region
    _
  $region5: #{b_tier_forward.1} parent=0 // pred_fallthru
    _
  // Predicated region
  $region6: #{b_tier_forward.1} parent=0 // pred_check
    _
  $region7: #{b_tier_forward.1} parent=0 // pred_check_branch
    %17 = sbr.rel (0) target = $region9
  $region8: #{b_tier_forward.1} parent=0 // pred_region
    _
  $region9: #{b_tier_forward.1} parent=0 // pred_fallthru
    _
  // Predicated region
  $region10: #{b_tier_forward.1} parent=0 // pred_check
    _
  $region11: #{b_tier_forward.1} parent=0 // pred_check_branch
    %19 = sbr.rel (0) target = $region13
  $region12: #{b_tier_forward.1} parent=0 // pred_region
    _
  $region13: #{b_tier_forward.1} parent=0 // pred_fallthru
    _
  // Predicated region
  $region14: #{b_tier_forward.1} parent=0 // pred_check
    _
  $region15: #{b_tier_forward.1} parent=0 // pred_check_branch
    %21 = sbr.rel (0) target = $region17
  $region16: #{b_tier_forward.1} parent=0 // pred_region
    _
  $region17: #{b_tier_forward.1} parent=0 // pred_fallthru
    _
  // Predicated region
  $region18: #{b_tier_forward.1} parent=0 // pred_check
    _
  $region19: #{b_tier_forward.1} parent=0 // pred_check_branch
    %23 = sbr.rel (0) target = $region21
  $region20: #{b_tier_forward.1} parent=0 // pred_region
    _
  $region21: #{b_tier_forward.1} parent=0 // pred_fallthru
    _
  // Predicated region
  $region22: #{b_tier_forward.1} parent=0 // pred_check
    _
  $region23: #{b_tier_forward.1} parent=0 // pred_check_branch
    %25 = sbr.rel (0) target = $region25
  $region24: #{b_tier_forward.1} parent=0 // pred_region
    _
  $region25: #{b_tier_forward.1} parent=0 // pred_fallthru
    _
  // Predicated region
  $region26: #{b_tier_forward.1} parent=0 // pred_check
    _
  $region27: #{b_tier_forward.1} parent=0 // pred_check_branch
    %27 = sbr.rel (0) target = $region29
  $region28: #{b_tier_forward.1} parent=0 // pred_region
    _
  $region29: #{b_tier_forward.1} parent=0 // pred_fallthru
    _
  %p28 = scmp.eq.s32.totalorder 0, 0
  // Predicated region
  $region30: #{b_tier_forward.1} parent=0 // pred_check
    %p29 = pneg %p28
  $region31: #{b_tier_forward.1} parent=0 // pred_check_branch
    %31 = sbr.rel (%p29) target = $region33
  $region32: #{b_tier_forward.1} parent=0 // pred_region
    %v32 = vld [vmem:[%s1] sm:$0xff]
    %33 = vst [vmem:[#allocation2] sm:$0xff] %v32
  $region33: #{b_tier_forward.1} parent=0 // pred_fallthru
    _
  %v34 = vld [vmem:[%s0] sm:$0xff]
  %v35 = vld [vmem:[%s0 + $0x8] sm:$0xff]
  %v36 = vld [vmem:[%s0 + $0x10] sm:$0xff]
  %v37 = vld [vmem:[%s0 + $0x18] sm:$0xff]
  %v38 = vld [vmem:[%s0 + $0x20] sm:$0xff]
  %v39 = vld [vmem:[%s0 + $0x28] sm:$0xff]
  %v40 = vld [vmem:[%s0 + $0x30] sm:$0xff]
  %v41 = vld [vmem:[%s0 + $0x38] sm:$0xff]
  %v42 = vld [vmem:[%s0 + $0x40] sm:$0xff]
  %v43 = vld [vmem:[%s0 + $0x48] sm:$0xff]
  %v44 = vld [vmem:[%s0 + $0x50] sm:$0xff]
  %v45 = vld [vmem:[%s0 + $0x58] sm:$0xff]
  %v46 = vld [vmem:[%s0 + $0x60] sm:$0xff]
  %v47 = vld [vmem:[%s0 + $0x68] sm:$0xff]
  %v48 = vld [vmem:[%s0 + $0x70] sm:$0xff]
  %v49 = vld [vmem:[%s0 + $0x78] sm:$0xff]
  %v50 = vld [vmem:[%s0 + $0x80] sm:$0xff]
  %v51 = vld [vmem:[%s0 + $0x88] sm:$0xff]
  %v52 = vld [vmem:[%s0 + $0x90] sm:$0xff]
  %v53 = vld [vmem:[%s0 + $0x98] sm:$0xff]
  %v54 = vld [vmem:[%s0 + $0xa0] sm:$0xff]
  %v55 = vld [vmem:[%s0 + $0xa8] sm:$0xff]
  %v56 = vld [vmem:[%s0 + $0xb0] sm:$0xff]
  %v57 = vld [vmem:[%s0 + $0xb8] sm:$0xff]
  %v58 = vld [vmem:[%s5] sm:$0x1]
  %v60 = vperm.slane %v58, 0
  %v62 = vld [vmem:[%s2] sm:$0xff]
  %v63 = vld [vmem:[%s2 + $0x8] sm:$0xff]
  %vm64 = vcmask 130048
  %v66 = vsel %vm64, %v34, 0
  %v69 = vsel %vm64, %v37, 0
  %v72 = vsel %vm64, %v40, 0
  %v75 = vsel %vm64, %v43, 0
  %v78 = vsel %vm64, %v46, 0
  %v81 = vsel %vm64, %v49, 0
  %v84 = vsel %vm64, %v52, 0
  %v87 = vsel %vm64, %v55, 0
  %89 = vmatpush.msra.mxu0 0.0
  %90 = vmatpush.msra.mxu0 0.0
  %91 = vmatpush.msra.mxu0 0.0
  %92 = vmatpush.msra.mxu0 0.0
  %93 = vmatpush.msra.mxu0 0.0
  %94 = vmatpush.msra.mxu0 0.0
  %95 = vmatpush.msra.mxu0 0.0
  %96 = vmatpush.msra.mxu0 0.0
  %97 = vmatpush.msra.mxu0 0.0
  %98 = vmatpush.msra.mxu0 0.0
  %99 = vmatpush.msra.mxu0 0.0
  %100 = vmatpush.msra.mxu0 0.0
  %101 = vmatpush.msra.mxu0 0.0
  %102 = vmatpush.msra.mxu0 0.0
  %103 = vmatpush.msra.mxu0 %v63
  %104 = vmatpush.msra.mxu0 %v62
  %105 = vmatmul.f32.gmra.mxu0 %v66
  %v106 = vpop.f32.mrf.mxu0
  %v107 = vadd.f32 0.0, %v106
  %108 = vmatmul.f32.gmra.mxu0 %v69
  %v109 = vpop.f32.mrf.mxu0
  %v110 = vadd.f32 0.0, %v109
  %111 = vmatmul.f32.gmra.mxu0 %v72
  %v112 = vpop.f32.mrf.mxu0
  %v113 = vadd.f32 0.0, %v112
  %114 = vmatmul.f32.gmra.mxu0 %v75
  %v115 = vpop.f32.mrf.mxu0
  %v116 = vadd.f32 0.0, %v115
  %117 = vmatmul.f32.gmra.mxu0 %v78
  %v118 = vpop.f32.mrf.mxu0
  %v119 = vadd.f32 0.0, %v118
  %120 = vmatmul.f32.gmra.mxu0 %v81
  %v121 = vpop.f32.mrf.mxu0
  %v122 = vadd.f32 0.0, %v121
  %123 = vmatmul.f32.gmra.mxu0 %v84
  %v124 = vpop.f32.mrf.mxu0
  %v125 = vadd.f32 0.0, %v124
  %126 = vmatmul.f32.gmra.mxu0 %v87
  %v127 = vpop.f32.mrf.mxu0
  %v128 = vadd.f32 0.0, %v127
  %129 = vdwg.mxu0
  %v130 = vadd.f32 %v60, %v107
  %v131 = vadd.f32 %v60, %v110
  %v132 = vadd.f32 %v60, %v113
  %v133 = vadd.f32 %v60, %v116
  %v134 = vadd.f32 %v60, %v119
  %v135 = vadd.f32 %v60, %v122
  %v136 = vadd.f32 %v60, %v125
  %v137 = vadd.f32 %v60, %v128
  %s138 = scalar_lea.vmem %s2, 16
  %v139 = vld [vmem:[%s138] sm:$0xff]
  %v140 = vld [vmem:[%s138 + $0x8] sm:$0xff]
  %v142 = vsel %vm64, %v35, 0
  %v145 = vsel %vm64, %v38, 0
  %v148 = vsel %vm64, %v41, 0
  %v151 = vsel %vm64, %v44, 0
  %v154 = vsel %vm64, %v47, 0
  %v157 = vsel %vm64, %v50, 0
  %v160 = vsel %vm64, %v53, 0
  %v163 = vsel %vm64, %v56, 0
  %165 = vmatpush.msra.mxu0 0.0
  %166 = vmatpush.msra.mxu0 0.0
  %167 = vmatpush.msra.mxu0 0.0
  %168 = vmatpush.msra.mxu0 0.0
  %169 = vmatpush.msra.mxu0 0.0
  %170 = vmatpush.msra.mxu0 0.0
  %171 = vmatpush.msra.mxu0 0.0
  %172 = vmatpush.msra.mxu0 0.0
  %173 = vmatpush.msra.mxu0 0.0
  %174 = vmatpush.msra.mxu0 0.0
  %175 = vmatpush.msra.mxu0 0.0
  %176 = vmatpush.msra.mxu0 0.0
  %177 = vmatpush.msra.mxu0 0.0
  %178 = vmatpush.msra.mxu0 0.0
  %179 = vmatpush.msra.mxu0 %v140
  %180 = vmatpush.msra.mxu0 %v139
  %181 = vmatmul.f32.gmra.mxu0 %v142
  %v182 = vpop.f32.mrf.mxu0
  %v183 = vadd.f32 0.0, %v182
  %184 = vmatmul.f32.gmra.mxu0 %v145
  %v185 = vpop.f32.mrf.mxu0
  %v186 = vadd.f32 0.0, %v185
  %187 = vmatmul.f32.gmra.mxu0 %v148
  %v188 = vpop.f32.mrf.mxu0
  %v189 = vadd.f32 0.0, %v188
  %190 = vmatmul.f32.gmra.mxu0 %v151
  %v191 = vpop.f32.mrf.mxu0
  %v192 = vadd.f32 0.0, %v191
  %193 = vmatmul.f32.gmra.mxu0 %v154
  %v194 = vpop.f32.mrf.mxu0
  %v195 = vadd.f32 0.0, %v194
  %196 = vmatmul.f32.gmra.mxu0 %v157
  %v197 = vpop.f32.mrf.mxu0
  %v198 = vadd.f32 0.0, %v197
  %199 = vmatmul.f32.gmra.mxu0 %v160
  %v200 = vpop.f32.mrf.mxu0
  %v201 = vadd.f32 0.0, %v200
  %202 = vmatmul.f32.gmra.mxu0 %v163
  %v203 = vpop.f32.mrf.mxu0
  %v204 = vadd.f32 0.0, %v203
  %205 = vdwg.mxu0
  %v206 = vadd.f32 %v130, %v183
  %v207 = vadd.f32 %v131, %v186
  %v208 = vadd.f32 %v132, %v189
  %v209 = vadd.f32 %v133, %v192
  %v210 = vadd.f32 %v134, %v195
  %v211 = vadd.f32 %v135, %v198
  %v212 = vadd.f32 %v136, %v201
  %v213 = vadd.f32 %v137, %v204
  %s214 = scalar_lea.vmem %s2, 32
  %v215 = vld [vmem:[%s214] sm:$0xff]
  %v216 = vld [vmem:[%s214 + $0x8] sm:$0xff]
  %v218 = vsel %vm64, %v36, 0
  %v221 = vsel %vm64, %v39, 0
  %v224 = vsel %vm64, %v42, 0
  %v227 = vsel %vm64, %v45, 0
  %v230 = vsel %vm64, %v48, 0
  %v233 = vsel %vm64, %v51, 0
  %v236 = vsel %vm64, %v54, 0
  %v239 = vsel %vm64, %v57, 0
  %241 = vmatpush.msra.mxu0 0.0
  %242 = vmatpush.msra.mxu0 0.0
  %243 = vmatpush.msra.mxu0 0.0
  %244 = vmatpush.msra.mxu0 0.0
  %245 = vmatpush.msra.mxu0 0.0
  %246 = vmatpush.msra.mxu0 0.0
  %247 = vmatpush.msra.mxu0 0.0
  %248 = vmatpush.msra.mxu0 0.0
  %249 = vmatpush.msra.mxu0 0.0
  %250 = vmatpush.msra.mxu0 0.0
  %251 = vmatpush.msra.mxu0 0.0
  %252 = vmatpush.msra.mxu0 0.0
  %253 = vmatpush.msra.mxu0 0.0
  %254 = vmatpush.msra.mxu0 0.0
  %255 = vmatpush.msra.mxu0 %v216
  %256 = vmatpush.msra.mxu0 %v215
  %257 = vmatmul.f32.gmra.mxu0 %v218
  %v258 = vpop.f32.mrf.mxu0
  %v259 = vadd.f32 0.0, %v258
  %260 = vmatmul.f32.gmra.mxu0 %v221
  %v261 = vpop.f32.mrf.mxu0
  %v262 = vadd.f32 0.0, %v261
  %263 = vmatmul.f32.gmra.mxu0 %v224
  %v264 = vpop.f32.mrf.mxu0
  %v265 = vadd.f32 0.0, %v264
  %266 = vmatmul.f32.gmra.mxu0 %v227
  %v267 = vpop.f32.mrf.mxu0
  %v268 = vadd.f32 0.0, %v267
  %269 = vmatmul.f32.gmra.mxu0 %v230
  %v270 = vpop.f32.mrf.mxu0
  %v271 = vadd.f32 0.0, %v270
  %272 = vmatmul.f32.gmra.mxu0 %v233
  %v273 = vpop.f32.mrf.mxu0
  %v274 = vadd.f32 0.0, %v273
  %275 = vmatmul.f32.gmra.mxu0 %v236
  %v276 = vpop.f32.mrf.mxu0
  %v277 = vadd.f32 0.0, %v276
  %278 = vmatmul.f32.gmra.mxu0 %v239
  %v279 = vpop.f32.mrf.mxu0
  %v280 = vadd.f32 0.0, %v279
  %281 = vdwg.mxu0
  %v282 = vadd.f32 %v206, %v259
  %v283 = vadd.f32 %v207, %v262
  %v284 = vadd.f32 %v208, %v265
  %v285 = vadd.f32 %v209, %v268
  %v286 = vadd.f32 %v210, %v271
  %v287 = vadd.f32 %v211, %v274
  %v288 = vadd.f32 %v212, %v277
  %v289 = vadd.f32 %v213, %v280
  %290 = vst [vmem:[#allocation3] sm:$0xff] %v282
  %291 = vst [vmem:[#allocation3 + $0x8] sm:$0xff] %v283
  %292 = vst [vmem:[#allocation3 + $0x10] sm:$0xff] %v284
  %293 = vst [vmem:[#allocation3 + $0x18] sm:$0xff] %v285
  %294 = vst [vmem:[#allocation3 + $0x20] sm:$0xff] %v286
  %295 = vst [vmem:[#allocation3 + $0x28] sm:$0xff] %v287
  %296 = vst [vmem:[#allocation3 + $0x30] sm:$0xff] %v288
  %297 = vst [vmem:[#allocation3 + $0x38] sm:$0xff] %v289
  %v298 = vld [vmem:[%s3] sm:$0xff]
  %v299 = vld [vmem:[%s3 + $0x8] sm:$0xff]
  %v300 = vld [vmem:[%s3 + $0x10] sm:$0xff]
  %v301 = vld [vmem:[%s3 + $0x18] sm:$0xff]
  %v302 = vld [vmem:[%s3 + $0x20] sm:$0xff]
  %v303 = vld [vmem:[%s3 + $0x28] sm:$0xff]
  %v304 = vld [vmem:[%s3 + $0x30] sm:$0xff]
  %v305 = vld [vmem:[%s3 + $0x38] sm:$0xff]
  %v306 = vld [vmem:[%s3 + $0x40] sm:$0xff]
  %v307 = vld [vmem:[%s3 + $0x48] sm:$0xff]
  %v308 = vld [vmem:[%s3 + $0x50] sm:$0xff]
  %v309 = vld [vmem:[%s3 + $0x58] sm:$0xff]
  %v310 = vld [vmem:[%s3 + $0x60] sm:$0xff]
  %v311 = vld [vmem:[%s3 + $0x68] sm:$0xff]
  %v312 = vld [vmem:[%s3 + $0x70] sm:$0xff]
  %v313 = vld [vmem:[%s3 + $0x78] sm:$0xff]
  %v314 = vld [vmem:[#allocation2] sm:$0xff]
  %v315 = vld [vmem:[#allocation3] sm:$0x1]
  %v316 = vld [vmem:[#allocation3 + $0x8] sm:$0x1]
  %v317 = vld [vmem:[#allocation3 + $0x10] sm:$0x1]
  %v318 = vld [vmem:[#allocation3 + $0x18] sm:$0x1]
  %v319 = vld [vmem:[#allocation3 + $0x20] sm:$0x1]
  %v320 = vld [vmem:[#allocation3 + $0x28] sm:$0x1]
  %v321 = vld [vmem:[#allocation3 + $0x30] sm:$0x1]
  %v322 = vld [vmem:[#allocation3 + $0x38] sm:$0x1]
  %323 = vmatpush.msra.mxu0 %v313
  %324 = vmatpush.msra.mxu0 %v312
  %325 = vmatpush.msra.mxu0 %v311
  %326 = vmatpush.msra.mxu0 %v310
  %327 = vmatpush.msra.mxu0 %v309
  %328 = vmatpush.msra.mxu0 %v308
  %329 = vmatpush.msra.mxu0 %v307
  %330 = vmatpush.msra.mxu0 %v306
  %331 = vmatpush.msra.mxu0 %v305
  %332 = vmatpush.msra.mxu0 %v304
  %333 = vmatpush.msra.mxu0 %v303
  %334 = vmatpush.msra.mxu0 %v302
  %335 = vmatpush.msra.mxu0 %v301
  %336 = vmatpush.msra.mxu0 %v300
  %337 = vmatpush.msra.mxu0 %v299
  %338 = vmatpush.msra.mxu0 %v298
  %339 = vmatmul.f32.gmra.mxu0 %v314
  %v340 = vpop.f32.mrf.mxu0
  %v341 = vadd.f32 0.0, %v340
  %342 = vdwg.mxu0
  %v344 = vrot.slane %v341, 1
  %v345 = vrot.slane %v341, 2
  %v346 = vrot.slane %v341, 3
  %v347 = vrot.slane %v341, 4
  %v348 = vrot.slane %v341, 5
  %v349 = vrot.slane %v341, 6
  %v350 = vrot.slane %v341, 7
  %v359 = vadd.f32 %v315, %v341
  %v360 = vadd.f32 %v316, %v344
  %v361 = vadd.f32 %v317, %v345
  %v362 = vadd.f32 %v318, %v346
  %v363 = vadd.f32 %v319, %v347
  %v364 = vadd.f32 %v320, %v348
  %v365 = vadd.f32 %v321, %v349
  %v366 = vadd.f32 %v322, %v350
  %v367 = vtanh.pop %v359
  %v368 = vtanh.pop %v360
  %v369 = vtanh.pop %v361
  %v370 = vtanh.pop %v362
  %v371 = vtanh.pop %v363
  %v372 = vtanh.pop %v364
  %v373 = vtanh.pop %v365
  %v374 = vtanh.pop %v366
  %375 = vst [vmem:[#allocation4] sm:$0x1] %v367
  %376 = vst [vmem:[#allocation4 + $0x8] sm:$0x1] %v368
  %377 = vst [vmem:[#allocation4 + $0x10] sm:$0x1] %v369
  %378 = vst [vmem:[#allocation4 + $0x18] sm:$0x1] %v370
  %379 = vst [vmem:[#allocation4 + $0x20] sm:$0x1] %v371
  %380 = vst [vmem:[#allocation4 + $0x28] sm:$0x1] %v372
  %381 = vst [vmem:[#allocation4 + $0x30] sm:$0x1] %v373
  %382 = vst [vmem:[#allocation4 + $0x38] sm:$0x1] %v374
  %v383 = vld [vmem:[#allocation3 + $0x1] sm:$0x1]
  %v384 = vld [vmem:[#allocation3 + $0x9] sm:$0x1]
  %v385 = vld [vmem:[#allocation3 + $0x11] sm:$0x1]
  %v386 = vld [vmem:[#allocation3 + $0x19] sm:$0x1]
  %v387 = vld [vmem:[#allocation3 + $0x21] sm:$0x1]
  %v388 = vld [vmem:[#allocation3 + $0x29] sm:$0x1]
  %v389 = vld [vmem:[#allocation3 + $0x31] sm:$0x1]
  %v390 = vld [vmem:[#allocation3 + $0x39] sm:$0x1]
  %v399 = vrot.slane %v368, 7
  %vm400 = vcmask 1041409
  %v401 = vsel %vm400, %v399, %v367
  %v402 = vrot.slane %v369, 6
  %vm403 = vcmask 1042434
  %v404 = vsel %vm403, %v402, %v401
  %v405 = vrot.slane %v370, 5
  %vm406 = vcmask 1043459
  %v407 = vsel %vm406, %v405, %v404
  %v408 = vrot.slane %v371, 4
  %vm409 = vcmask 1044484
  %v410 = vsel %vm409, %v408, %v407
  %v411 = vrot.slane %v372, 3
  %vm412 = vcmask 1045509
  %v413 = vsel %vm412, %v411, %v410
  %v414 = vrot.slane %v373, 2
  %vm415 = vcmask 1046534
  %v416 = vsel %vm415, %v414, %v413
  %v417 = vrot.slane %v374, 1
  %vm418 = vcmask 1047559
  %v419 = vsel %vm418, %v417, %v416
  %421 = vmatpush.msra.mxu0 %v313
  %422 = vmatpush.msra.mxu0 %v312
  %423 = vmatpush.msra.mxu0 %v311
  %424 = vmatpush.msra.mxu0 %v310
  %425 = vmatpush.msra.mxu0 %v309
  %426 = vmatpush.msra.mxu0 %v308
  %427 = vmatpush.msra.mxu0 %v307
  %428 = vmatpush.msra.mxu0 %v306
  %429 = vmatpush.msra.mxu0 %v305
  %430 = vmatpush.msra.mxu0 %v304
  %431 = vmatpush.msra.mxu0 %v303
  %432 = vmatpush.msra.mxu0 %v302
  %433 = vmatpush.msra.mxu0 %v301
  %434 = vmatpush.msra.mxu0 %v300
  %435 = vmatpush.msra.mxu0 %v299
  %436 = vmatpush.msra.mxu0 %v298
  %437 = vmatmul.f32.gmra.mxu0 %v419
  %v438 = vpop.f32.mrf.mxu0
  %v439 = vadd.f32 0.0, %v438
  %440 = vdwg.mxu0
  %v442 = vrot.slane %v439, 1
  %v443 = vrot.slane %v439, 2
  %v444 = vrot.slane %v439, 3
  %v445 = vrot.slane %v439, 4
  %v446 = vrot.slane %v439, 5
  %v447 = vrot.slane %v439, 6
  %v448 = vrot.slane %v439, 7
  %v457 = vadd.f32 %v383, %v439
  %v458 = vadd.f32 %v384, %v442
  %v459 = vadd.f32 %v385, %v443
  %v460 = vadd.f32 %v386, %v444
  %v461 = vadd.f32 %v387, %v445
  %v462 = vadd.f32 %v388, %v446
  %v463 = vadd.f32 %v389, %v447
  %v464 = vadd.f32 %v390, %v448
  %v465 = vtanh.pop %v457
  %v466 = vtanh.pop %v458
  %v467 = vtanh.pop %v459
  %v468 = vtanh.pop %v460
  %v469 = vtanh.pop %v461
  %v470 = vtanh.pop %v462
  %v471 = vtanh.pop %v463
  %v472 = vtanh.pop %v464
  %473 = vst [vmem:[#allocation4 + $0x1] sm:$0x1] %v465
  %474 = vst [vmem:[#allocation4 + $0x9] sm:$0x1] %v466
  %475 = vst [vmem:[#allocation4 + $0x11] sm:$0x1] %v467
  %476 = vst [vmem:[#allocation4 + $0x19] sm:$0x1] %v468
  %477 = vst [vmem:[#allocation4 + $0x21] sm:$0x1] %v469
  %478 = vst [vmem:[#allocation4 + $0x29] sm:$0x1] %v470
  %479 = vst [vmem:[#allocation4 + $0x31] sm:$0x1] %v471
  %480 = vst [vmem:[#allocation4 + $0x39] sm:$0x1] %v472
  %v481 = vld [vmem:[#allocation3 + $0x2] sm:$0x1]
  %v482 = vld [vmem:[#allocation3 + $0xa] sm:$0x1]
  %v483 = vld [vmem:[#allocation3 + $0x12] sm:$0x1]
  %v484 = vld [vmem:[#allocation3 + $0x1a] sm:$0x1]
  %v485 = vld [vmem:[#allocation3 + $0x22] sm:$0x1]
  %v486 = vld [vmem:[#allocation3 + $0x2a] sm:$0x1]
  %v487 = vld [vmem:[#allocation3 + $0x32] sm:$0x1]
  %v488 = vld [vmem:[#allocation3 + $0x3a] sm:$0x1]
  %v497 = vrot.slane %v466, 7
  %v498 = vsel %vm400, %v497, %v465
  %v499 = vrot.slane %v467, 6
  %v500 = vsel %vm403, %v499, %v498
  %v501 = vrot.slane %v468, 5
  %v502 = vsel %vm406, %v501, %v500
  %v503 = vrot.slane %v469, 4
  %v504 = vsel %vm409, %v503, %v502
  %v505 = vrot.slane %v470, 3
  %v506 = vsel %vm412, %v505, %v504
  %v507 = vrot.slane %v471, 2
  %v508 = vsel %vm415, %v507, %v506
  %v509 = vrot.slane %v472, 1
  %v510 = vsel %vm418, %v509, %v508
  %512 = vmatpush.msra.mxu0 %v313
  %513 = vmatpush.msra.mxu0 %v312
  %514 = vmatpush.msra.mxu0 %v311
  %515 = vmatpush.msra.mxu0 %v310
  %516 = vmatpush.msra.mxu0 %v309
  %517 = vmatpush.msra.mxu0 %v308
  %518 = vmatpush.msra.mxu0 %v307
  %519 = vmatpush.msra.mxu0 %v306
  %520 = vmatpush.msra.mxu0 %v305
  %521 = vmatpush.msra.mxu0 %v304
  %522 = vmatpush.msra.mxu0 %v303
  %523 = vmatpush.msra.mxu0 %v302
  %524 = vmatpush.msra.mxu0 %v301
  %525 = vmatpush.msra.mxu0 %v300
  %526 = vmatpush.msra.mxu0 %v299
  %527 = vmatpush.msra.mxu0 %v298
  %528 = vmatmul.f32.gmra.mxu0 %v510
  %v529 = vpop.f32.mrf.mxu0
  %v530 = vadd.f32 0.0, %v529
  %531 = vdwg.mxu0
  %v533 = vrot.slane %v530, 1
  %v534 = vrot.slane %v530, 2
  %v535 = vrot.slane %v530, 3
  %v536 = vrot.slane %v530, 4
  %v537 = vrot.slane %v530, 5
  %v538 = vrot.slane %v530, 6
  %v539 = vrot.slane %v530, 7
  %v548 = vadd.f32 %v481, %v530
  %v549 = vadd.f32 %v482, %v533
  %v550 = vadd.f32 %v483, %v534
  %v551 = vadd.f32 %v484, %v535
  %v552 = vadd.f32 %v485, %v536
  %v553 = vadd.f32 %v486, %v537
  %v554 = vadd.f32 %v487, %v538
  %v555 = vadd.f32 %v488, %v539
  %v556 = vtanh.pop %v548
  %v557 = vtanh.pop %v549
  %v558 = vtanh.pop %v550
  %v559 = vtanh.pop %v551
  %v560 = vtanh.pop %v552
  %v561 = vtanh.pop %v553
  %v562 = vtanh.pop %v554
  %v563 = vtanh.pop %v555
  %564 = vst [vmem:[#allocation4 + $0x2] sm:$0x1] %v556
  %565 = vst [vmem:[#allocation4 + $0xa] sm:$0x1] %v557
  %566 = vst [vmem:[#allocation4 + $0x12] sm:$0x1] %v558
  %567 = vst [vmem:[#allocation4 + $0x1a] sm:$0x1] %v559
  %568 = vst [vmem:[#allocation4 + $0x22] sm:$0x1] %v560
  %569 = vst [vmem:[#allocation4 + $0x2a] sm:$0x1] %v561
  %570 = vst [vmem:[#allocation4 + $0x32] sm:$0x1] %v562
  %571 = vst [vmem:[#allocation4 + $0x3a] sm:$0x1] %v563
  %v572 = vld [vmem:[#allocation3 + $0x3] sm:$0x1]
  %v573 = vld [vmem:[#allocation3 + $0xb] sm:$0x1]
  %v574 = vld [vmem:[#allocation3 + $0x13] sm:$0x1]
  %v575 = vld [vmem:[#allocation3 + $0x1b] sm:$0x1]
  %v576 = vld [vmem:[#allocation3 + $0x23] sm:$0x1]
  %v577 = vld [vmem:[#allocation3 + $0x2b] sm:$0x1]
  %v578 = vld [vmem:[#allocation3 + $0x33] sm:$0x1]
  %v579 = vld [vmem:[#allocation3 + $0x3b] sm:$0x1]
  %v588 = vrot.slane %v557, 7
  %v589 = vsel %vm400, %v588, %v556
  %v590 = vrot.slane %v558, 6
  %v591 = vsel %vm403, %v590, %v589
  %v592 = vrot.slane %v559, 5
  %v593 = vsel %vm406, %v592, %v591
  %v594 = vrot.slane %v560, 4
  %v595 = vsel %vm409, %v594, %v593
  %v596 = vrot.slane %v561, 3
  %v597 = vsel %vm412, %v596, %v595
  %v598 = vrot.slane %v562, 2
  %v599 = vsel %vm415, %v598, %v597
  %v600 = vrot.slane %v563, 1
  %v601 = vsel %vm418, %v600, %v599
  %603 = vmatpush.msra.mxu0 %v313
  %604 = vmatpush.msra.mxu0 %v312
  %605 = vmatpush.msra.mxu0 %v311
  %606 = vmatpush.msra.mxu0 %v310
  %607 = vmatpush.msra.mxu0 %v309
  %608 = vmatpush.msra.mxu0 %v308
  %609 = vmatpush.msra.mxu0 %v307
  %610 = vmatpush.msra.mxu0 %v306
  %611 = vmatpush.msra.mxu0 %v305
  %612 = vmatpush.msra.mxu0 %v304
  %613 = vmatpush.msra.mxu0 %v303
  %614 = vmatpush.msra.mxu0 %v302
  %615 = vmatpush.msra.mxu0 %v301
  %616 = vmatpush.msra.mxu0 %v300
  %617 = vmatpush.msra.mxu0 %v299
  %618 = vmatpush.msra.mxu0 %v298
  %619 = vmatmul.f32.gmra.mxu0 %v601
  %v620 = vpop.f32.mrf.mxu0
  %v621 = vadd.f32 0.0, %v620
  %622 = vdwg.mxu0
  %v624 = vrot.slane %v621, 1
  %v625 = vrot.slane %v621, 2
  %v626 = vrot.slane %v621, 3
  %v627 = vrot.slane %v621, 4
  %v628 = vrot.slane %v621, 5
  %v629 = vrot.slane %v621, 6
  %v630 = vrot.slane %v621, 7
  %v639 = vadd.f32 %v572, %v621
  %v640 = vadd.f32 %v573, %v624
  %v641 = vadd.f32 %v574, %v625
  %v642 = vadd.f32 %v575, %v626
  %v643 = vadd.f32 %v576, %v627
  %v644 = vadd.f32 %v577, %v628
  %v645 = vadd.f32 %v578, %v629
  %v646 = vadd.f32 %v579, %v630
  %v647 = vtanh.pop %v639
  %v648 = vtanh.pop %v640
  %v649 = vtanh.pop %v641
  %v650 = vtanh.pop %v642
  %v651 = vtanh.pop %v643
  %v652 = vtanh.pop %v644
  %v653 = vtanh.pop %v645
  %v654 = vtanh.pop %v646
  %655 = vst [vmem:[#allocation4 + $0x3] sm:$0x1] %v647
  %656 = vst [vmem:[#allocation4 + $0xb] sm:$0x1] %v648
  %657 = vst [vmem:[#allocation4 + $0x13] sm:$0x1] %v649
  %658 = vst [vmem:[#allocation4 + $0x1b] sm:$0x1] %v650
  %659 = vst [vmem:[#allocation4 + $0x23] sm:$0x1] %v651
  %660 = vst [vmem:[#allocation4 + $0x2b] sm:$0x1] %v652
  %661 = vst [vmem:[#allocation4 + $0x33] sm:$0x1] %v653
  %662 = vst [vmem:[#allocation4 + $0x3b] sm:$0x1] %v654
  %v663 = vld [vmem:[#allocation3 + $0x4] sm:$0x1]
  %v664 = vld [vmem:[#allocation3 + $0xc] sm:$0x1]
  %v665 = vld [vmem:[#allocation3 + $0x14] sm:$0x1]
  %v666 = vld [vmem:[#allocation3 + $0x1c] sm:$0x1]
  %v667 = vld [vmem:[#allocation3 + $0x24] sm:$0x1]
  %v668 = vld [vmem:[#allocation3 + $0x2c] sm:$0x1]
  %v669 = vld [vmem:[#allocation3 + $0x34] sm:$0x1]
  %v670 = vld [vmem:[#allocation3 + $0x3c] sm:$0x1]
  %v679 = vrot.slane %v648, 7
  %v680 = vsel %vm400, %v679, %v647
  %v681 = vrot.slane %v649, 6
  %v682 = vsel %vm403, %v681, %v680
  %v683 = vrot.slane %v650, 5
  %v684 = vsel %vm406, %v683, %v682
  %v685 = vrot.slane %v651, 4
  %v686 = vsel %vm409, %v685, %v684
  %v687 = vrot.slane %v652, 3
  %v688 = vsel %vm412, %v687, %v686
  %v689 = vrot.slane %v653, 2
  %v690 = vsel %vm415, %v689, %v688
  %v691 = vrot.slane %v654, 1
  %v692 = vsel %vm418, %v691, %v690
  %694 = vmatpush.msra.mxu0 %v313
  %695 = vmatpush.msra.mxu0 %v312
  %696 = vmatpush.msra.mxu0 %v311
  %697 = vmatpush.msra.mxu0 %v310
  %698 = vmatpush.msra.mxu0 %v309
  %699 = vmatpush.msra.mxu0 %v308
  %700 = vmatpush.msra.mxu0 %v307
  %701 = vmatpush.msra.mxu0 %v306
  %702 = vmatpush.msra.mxu0 %v305
  %703 = vmatpush.msra.mxu0 %v304
  %704 = vmatpush.msra.mxu0 %v303
  %705 = vmatpush.msra.mxu0 %v302
  %706 = vmatpush.msra.mxu0 %v301
  %707 = vmatpush.msra.mxu0 %v300
  %708 = vmatpush.msra.mxu0 %v299
  %709 = vmatpush.msra.mxu0 %v298
  %710 = vmatmul.f32.gmra.mxu0 %v692
  %v711 = vpop.f32.mrf.mxu0
  %v712 = vadd.f32 0.0, %v711
  %713 = vdwg.mxu0
  %v715 = vrot.slane %v712, 1
  %v716 = vrot.slane %v712, 2
  %v717 = vrot.slane %v712, 3
  %v718 = vrot.slane %v712, 4
  %v719 = vrot.slane %v712, 5
  %v720 = vrot.slane %v712, 6
  %v721 = vrot.slane %v712, 7
  %v730 = vadd.f32 %v663, %v712
  %v731 = vadd.f32 %v664, %v715
  %v732 = vadd.f32 %v665, %v716
  %v733 = vadd.f32 %v666, %v717
  %v734 = vadd.f32 %v667, %v718
  %v735 = vadd.f32 %v668, %v719
  %v736 = vadd.f32 %v669, %v720
  %v737 = vadd.f32 %v670, %v721
  %v738 = vtanh.pop %v730
  %v739 = vtanh.pop %v731
  %v740 = vtanh.pop %v732
  %v741 = vtanh.pop %v733
  %v742 = vtanh.pop %v734
  %v743 = vtanh.pop %v735
  %v744 = vtanh.pop %v736
  %v745 = vtanh.pop %v737
  %746 = vst [vmem:[#allocation4 + $0x4] sm:$0x1] %v738
  %747 = vst [vmem:[#allocation4 + $0xc] sm:$0x1] %v739
  %748 = vst [vmem:[#allocation4 + $0x14] sm:$0x1] %v740
  %749 = vst [vmem:[#allocation4 + $0x1c] sm:$0x1] %v741
  %750 = vst [vmem:[#allocation4 + $0x24] sm:$0x1] %v742
  %751 = vst [vmem:[#allocation4 + $0x2c] sm:$0x1] %v743
  %752 = vst [vmem:[#allocation4 + $0x34] sm:$0x1] %v744
  %753 = vst [vmem:[#allocation4 + $0x3c] sm:$0x1] %v745
  %v754 = vld [vmem:[#allocation3 + $0x5] sm:$0x1]
  %v755 = vld [vmem:[#allocation3 + $0xd] sm:$0x1]
  %v756 = vld [vmem:[#allocation3 + $0x15] sm:$0x1]
  %v757 = vld [vmem:[#allocation3 + $0x1d] sm:$0x1]
  %v758 = vld [vmem:[#allocation3 + $0x25] sm:$0x1]
  %v759 = vld [vmem:[#allocation3 + $0x2d] sm:$0x1]
  %v760 = vld [vmem:[#allocation3 + $0x35] sm:$0x1]
  %v761 = vld [vmem:[#allocation3 + $0x3d] sm:$0x1]
  %v770 = vrot.slane %v739, 7
  %v771 = vsel %vm400, %v770, %v738
  %v772 = vrot.slane %v740, 6
  %v773 = vsel %vm403, %v772, %v771
  %v774 = vrot.slane %v741, 5
  %v775 = vsel %vm406, %v774, %v773
  %v776 = vrot.slane %v742, 4
  %v777 = vsel %vm409, %v776, %v775
  %v778 = vrot.slane %v743, 3
  %v779 = vsel %vm412, %v778, %v777
  %v780 = vrot.slane %v744, 2
  %v781 = vsel %vm415, %v780, %v779
  %v782 = vrot.slane %v745, 1
  %v783 = vsel %vm418, %v782, %v781
  %785 = vmatpush.msra.mxu0 %v313
  %786 = vmatpush.msra.mxu0 %v312
  %787 = vmatpush.msra.mxu0 %v311
  %788 = vmatpush.msra.mxu0 %v310
  %789 = vmatpush.msra.mxu0 %v309
  %790 = vmatpush.msra.mxu0 %v308
  %791 = vmatpush.msra.mxu0 %v307
  %792 = vmatpush.msra.mxu0 %v306
  %793 = vmatpush.msra.mxu0 %v305
  %794 = vmatpush.msra.mxu0 %v304
  %795 = vmatpush.msra.mxu0 %v303
  %796 = vmatpush.msra.mxu0 %v302
  %797 = vmatpush.msra.mxu0 %v301
  %798 = vmatpush.msra.mxu0 %v300
  %799 = vmatpush.msra.mxu0 %v299
  %800 = vmatpush.msra.mxu0 %v298
  %801 = vmatmul.f32.gmra.mxu0 %v783
  %v802 = vpop.f32.mrf.mxu0
  %v803 = vadd.f32 0.0, %v802
  %804 = vdwg.mxu0
  %v806 = vrot.slane %v803, 1
  %v807 = vrot.slane %v803, 2
  %v808 = vrot.slane %v803, 3
  %v809 = vrot.slane %v803, 4
  %v810 = vrot.slane %v803, 5
  %v811 = vrot.slane %v803, 6
  %v812 = vrot.slane %v803, 7
  %v821 = vadd.f32 %v754, %v803
  %v822 = vadd.f32 %v755, %v806
  %v823 = vadd.f32 %v756, %v807
  %v824 = vadd.f32 %v757, %v808
  %v825 = vadd.f32 %v758, %v809
  %v826 = vadd.f32 %v759, %v810
  %v827 = vadd.f32 %v760, %v811
  %v828 = vadd.f32 %v761, %v812
  %v829 = vtanh.pop %v821
  %v830 = vtanh.pop %v822
  %v831 = vtanh.pop %v823
  %v832 = vtanh.pop %v824
  %v833 = vtanh.pop %v825
  %v834 = vtanh.pop %v826
  %v835 = vtanh.pop %v827
  %v836 = vtanh.pop %v828
  %837 = vst [vmem:[#allocation4 + $0x5] sm:$0x1] %v829
  %838 = vst [vmem:[#allocation4 + $0xd] sm:$0x1] %v830
  %839 = vst [vmem:[#allocation4 + $0x15] sm:$0x1] %v831
  %840 = vst [vmem:[#allocation4 + $0x1d] sm:$0x1] %v832
  %841 = vst [vmem:[#allocation4 + $0x25] sm:$0x1] %v833
  %842 = vst [vmem:[#allocation4 + $0x2d] sm:$0x1] %v834
  %843 = vst [vmem:[#allocation4 + $0x35] sm:$0x1] %v835
  %844 = vst [vmem:[#allocation4 + $0x3d] sm:$0x1] %v836
  %v845 = vld [vmem:[#allocation3 + $0x6] sm:$0x1]
  %v846 = vld [vmem:[#allocation3 + $0xe] sm:$0x1]
  %v847 = vld [vmem:[#allocation3 + $0x16] sm:$0x1]
  %v848 = vld [vmem:[#allocation3 + $0x1e] sm:$0x1]
  %v849 = vld [vmem:[#allocation3 + $0x26] sm:$0x1]
  %v850 = vld [vmem:[#allocation3 + $0x2e] sm:$0x1]
  %v851 = vld [vmem:[#allocation3 + $0x36] sm:$0x1]
  %v852 = vld [vmem:[#allocation3 + $0x3e] sm:$0x1]
  %v861 = vrot.slane %v830, 7
  %v862 = vsel %vm400, %v861, %v829
  %v863 = vrot.slane %v831, 6
  %v864 = vsel %vm403, %v863, %v862
  %v865 = vrot.slane %v832, 5
  %v866 = vsel %vm406, %v865, %v864
  %v867 = vrot.slane %v833, 4
  %v868 = vsel %vm409, %v867, %v866
  %v869 = vrot.slane %v834, 3
  %v870 = vsel %vm412, %v869, %v868
  %v871 = vrot.slane %v835, 2
  %v872 = vsel %vm415, %v871, %v870
  %v873 = vrot.slane %v836, 1
  %v874 = vsel %vm418, %v873, %v872
  %876 = vmatpush.msra.mxu0 %v313
  %877 = vmatpush.msra.mxu0 %v312
  %878 = vmatpush.msra.mxu0 %v311
  %879 = vmatpush.msra.mxu0 %v310
  %880 = vmatpush.msra.mxu0 %v309
  %881 = vmatpush.msra.mxu0 %v308
  %882 = vmatpush.msra.mxu0 %v307
  %883 = vmatpush.msra.mxu0 %v306
  %884 = vmatpush.msra.mxu0 %v305
  %885 = vmatpush.msra.mxu0 %v304
  %886 = vmatpush.msra.mxu0 %v303
  %887 = vmatpush.msra.mxu0 %v302
  %888 = vmatpush.msra.mxu0 %v301
  %889 = vmatpush.msra.mxu0 %v300
  %890 = vmatpush.msra.mxu0 %v299
  %891 = vmatpush.msra.mxu0 %v298
  %892 = vmatmul.f32.gmra.mxu0 %v874
  %v893 = vpop.f32.mrf.mxu0
  %v894 = vadd.f32 0.0, %v893
  %895 = vdwg.mxu0
  %v897 = vrot.slane %v894, 1
  %v898 = vrot.slane %v894, 2
  %v899 = vrot.slane %v894, 3
  %v900 = vrot.slane %v894, 4
  %v901 = vrot.slane %v894, 5
  %v902 = vrot.slane %v894, 6
  %v903 = vrot.slane %v894, 7
  %v912 = vadd.f32 %v845, %v894
  %v913 = vadd.f32 %v846, %v897
  %v914 = vadd.f32 %v847, %v898
  %v915 = vadd.f32 %v848, %v899
  %v916 = vadd.f32 %v849, %v900
  %v917 = vadd.f32 %v850, %v901
  %v918 = vadd.f32 %v851, %v902
  %v919 = vadd.f32 %v852, %v903
  %v920 = vtanh.pop %v912
  %v921 = vtanh.pop %v913
  %v922 = vtanh.pop %v914
  %v923 = vtanh.pop %v915
  %v924 = vtanh.pop %v916
  %v925 = vtanh.pop %v917
  %v926 = vtanh.pop %v918
  %v927 = vtanh.pop %v919
  %928 = vst [vmem:[#allocation4 + $0x6] sm:$0x1] %v920
  %929 = vst [vmem:[#allocation4 + $0xe] sm:$0x1] %v921
  %930 = vst [vmem:[#allocation4 + $0x16] sm:$0x1] %v922
  %931 = vst [vmem:[#allocation4 + $0x1e] sm:$0x1] %v923
  %932 = vst [vmem:[#allocation4 + $0x26] sm:$0x1] %v924
  %933 = vst [vmem:[#allocation4 + $0x2e] sm:$0x1] %v925
  %934 = vst [vmem:[#allocation4 + $0x36] sm:$0x1] %v926
  %935 = vst [vmem:[#allocation4 + $0x3e] sm:$0x1] %v927
  %v936 = vld [vmem:[#allocation3 + $0x7] sm:$0x1]
  %v937 = vld [vmem:[#allocation3 + $0xf] sm:$0x1]
  %v938 = vld [vmem:[#allocation3 + $0x17] sm:$0x1]
  %v939 = vld [vmem:[#allocation3 + $0x1f] sm:$0x1]
  %v940 = vld [vmem:[#allocation3 + $0x27] sm:$0x1]
  %v941 = vld [vmem:[#allocation3 + $0x2f] sm:$0x1]
  %v942 = vld [vmem:[#allocation3 + $0x37] sm:$0x1]
  %v943 = vld [vmem:[#allocation3 + $0x3f] sm:$0x1]
  %v952 = vrot.slane %v921, 7
  %v953 = vsel %vm400, %v952, %v920
  %v954 = vrot.slane %v922, 6
  %v955 = vsel %vm403, %v954, %v953
  %v956 = vrot.slane %v923, 5
  %v957 = vsel %vm406, %v956, %v955
  %v958 = vrot.slane %v924, 4
  %v959 = vsel %vm409, %v958, %v957
  %v960 = vrot.slane %v925, 3
  %v961 = vsel %vm412, %v960, %v959
  %v962 = vrot.slane %v926, 2
  %v963 = vsel %vm415, %v962, %v961
  %v964 = vrot.slane %v927, 1
  %v965 = vsel %vm418, %v964, %v963
  %967 = vmatpush.msra.mxu0 %v313
  %968 = vmatpush.msra.mxu0 %v312
  %969 = vmatpush.msra.mxu0 %v311
  %970 = vmatpush.msra.mxu0 %v310
  %971 = vmatpush.msra.mxu0 %v309
  %972 = vmatpush.msra.mxu0 %v308
  %973 = vmatpush.msra.mxu0 %v307
  %974 = vmatpush.msra.mxu0 %v306
  %975 = vmatpush.msra.mxu0 %v305
  %976 = vmatpush.msra.mxu0 %v304
  %977 = vmatpush.msra.mxu0 %v303
  %978 = vmatpush.msra.mxu0 %v302
  %979 = vmatpush.msra.mxu0 %v301
  %980 = vmatpush.msra.mxu0 %v300
  %981 = vmatpush.msra.mxu0 %v299
  %982 = vmatpush.msra.mxu0 %v298
  %983 = vmatmul.f32.gmra.mxu0 %v965
  %v984 = vpop.f32.mrf.mxu0
  %v985 = vadd.f32 0.0, %v984
  %986 = vdwg.mxu0
  %v988 = vrot.slane %v985, 1
  %v989 = vrot.slane %v985, 2
  %v990 = vrot.slane %v985, 3
  %v991 = vrot.slane %v985, 4
  %v992 = vrot.slane %v985, 5
  %v993 = vrot.slane %v985, 6
  %v994 = vrot.slane %v985, 7
  %v1003 = vadd.f32 %v936, %v985
  %v1004 = vadd.f32 %v937, %v988
  %v1005 = vadd.f32 %v938, %v989
  %v1006 = vadd.f32 %v939, %v990
  %v1007 = vadd.f32 %v940, %v991
  %v1008 = vadd.f32 %v941, %v992
  %v1009 = vadd.f32 %v942, %v993
  %v1010 = vadd.f32 %v943, %v994
  %v1011 = vtanh.pop %v1003
  %v1012 = vtanh.pop %v1004
  %v1013 = vtanh.pop %v1005
  %v1014 = vtanh.pop %v1006
  %v1015 = vtanh.pop %v1007
  %v1016 = vtanh.pop %v1008
  %v1017 = vtanh.pop %v1009
  %v1018 = vtanh.pop %v1010
  %1019 = vst [vmem:[#allocation4 + $0x7] sm:$0x1] %v1011
  %1020 = vst [vmem:[#allocation4 + $0xf] sm:$0x1] %v1012
  %1021 = vst [vmem:[#allocation4 + $0x17] sm:$0x1] %v1013
  %1022 = vst [vmem:[#allocation4 + $0x1f] sm:$0x1] %v1014
  %1023 = vst [vmem:[#allocation4 + $0x27] sm:$0x1] %v1015
  %1024 = vst [vmem:[#allocation4 + $0x2f] sm:$0x1] %v1016
  %1025 = vst [vmem:[#allocation4 + $0x37] sm:$0x1] %v1017
  %1026 = vst [vmem:[#allocation4 + $0x3f] sm:$0x1] %v1018
  %v1035 = vrot.slane %v1012, 7
  %v1036 = vsel %vm400, %v1035, %v1011
  %v1037 = vrot.slane %v1013, 6
  %v1038 = vsel %vm403, %v1037, %v1036
  %v1039 = vrot.slane %v1014, 5
  %v1040 = vsel %vm406, %v1039, %v1038
  %v1041 = vrot.slane %v1015, 4
  %v1042 = vsel %vm409, %v1041, %v1040
  %v1043 = vrot.slane %v1016, 3
  %v1044 = vsel %vm412, %v1043, %v1042
  %v1045 = vrot.slane %v1017, 2
  %v1046 = vsel %vm415, %v1045, %v1044
  %v1047 = vrot.slane %v1018, 1
  %v1048 = vsel %vm418, %v1047, %v1046
  %1050 = vst [vmem:[#allocation2] sm:$0xff] %v1048
  %1051 = vst [vmem:[%s8] sm:$0xff] %v1048
  %v1052 = vld [vmem:[#allocation4] sm:$0xff]
  %v1053 = vld [vmem:[#allocation4 + $0x8] sm:$0xff]
  %v1054 = vld [vmem:[#allocation4 + $0x10] sm:$0xff]
  %v1055 = vld [vmem:[#allocation4 + $0x18] sm:$0xff]
  %v1056 = vld [vmem:[#allocation4 + $0x20] sm:$0xff]
  %v1057 = vld [vmem:[#allocation4 + $0x28] sm:$0xff]
  %v1058 = vld [vmem:[#allocation4 + $0x30] sm:$0xff]
  %v1059 = vld [vmem:[#allocation4 + $0x38] sm:$0xff]
  %v1060 = vld [vmem:[%s4] sm:$0xff]
  %v1061 = vld [vmem:[%s4 + $0x8] sm:$0xff]
  %v1062 = vld [vmem:[%s4 + $0x10] sm:$0xff]
  %v1063 = vld [vmem:[%s4 + $0x18] sm:$0xff]
  %v1064 = vld [vmem:[%s4 + $0x20] sm:$0xff]
  %v1065 = vld [vmem:[%s4 + $0x28] sm:$0xff]
  %v1066 = vld [vmem:[%s4 + $0x30] sm:$0xff]
  %v1067 = vld [vmem:[%s4 + $0x38] sm:$0xff]
  %v1068 = vld [vmem:[%s4 + $0x40] sm:$0xff]
  %v1069 = vld [vmem:[%s4 + $0x48] sm:$0xff]
  %v1070 = vld [vmem:[%s4 + $0x50] sm:$0xff]
  %v1071 = vld [vmem:[%s4 + $0x58] sm:$0xff]
  %v1072 = vld [vmem:[%s4 + $0x60] sm:$0xff]
  %v1073 = vld [vmem:[%s4 + $0x68] sm:$0xff]
  %v1074 = vld [vmem:[%s4 + $0x70] sm:$0xff]
  %v1075 = vld [vmem:[%s4 + $0x78] sm:$0xff]
  %v1076 = vld [vmem:[%s6] sm:$0x1]
  %v1078 = vperm.slane %v1076, 0
  %1080 = vmatpush.msra.mxu0 %v1075
  %1081 = vmatpush.msra.mxu0 %v1074
  %1082 = vmatpush.msra.mxu0 %v1073
  %1083 = vmatpush.msra.mxu0 %v1072
  %1084 = vmatpush.msra.mxu0 %v1071
  %1085 = vmatpush.msra.mxu0 %v1070
  %1086 = vmatpush.msra.mxu0 %v1069
  %1087 = vmatpush.msra.mxu0 %v1068
  %1088 = vmatpush.msra.mxu0 %v1067
  %1089 = vmatpush.msra.mxu0 %v1066
  %1090 = vmatpush.msra.mxu0 %v1065
  %1091 = vmatpush.msra.mxu0 %v1064
  %1092 = vmatpush.msra.mxu0 %v1063
  %1093 = vmatpush.msra.mxu0 %v1062
  %1094 = vmatpush.msra.mxu0 %v1061
  %1095 = vmatpush.msra.mxu0 %v1060
  %1096 = vmatmul.f32.gmra.mxu0 %v1052
  %v1097 = vpop.f32.mrf.mxu0
  %v1098 = vadd.f32 %v1078, %v1097
  %1099 = vmatmul.f32.gmra.mxu0 %v1053
  %v1100 = vpop.f32.mrf.mxu0
  %v1101 = vadd.f32 %v1078, %v1100
  %1102 = vmatmul.f32.gmra.mxu0 %v1054
  %v1103 = vpop.f32.mrf.mxu0
  %v1104 = vadd.f32 %v1078, %v1103
  %1105 = vmatmul.f32.gmra.mxu0 %v1055
  %v1106 = vpop.f32.mrf.mxu0
  %v1107 = vadd.f32 %v1078, %v1106
  %1108 = vmatmul.f32.gmra.mxu0 %v1056
  %v1109 = vpop.f32.mrf.mxu0
  %v1110 = vadd.f32 %v1078, %v1109
  %1111 = vmatmul.f32.gmra.mxu0 %v1057
  %v1112 = vpop.f32.mrf.mxu0
  %v1113 = vadd.f32 %v1078, %v1112
  %1114 = vmatmul.f32.gmra.mxu0 %v1058
  %v1115 = vpop.f32.mrf.mxu0
  %v1116 = vadd.f32 %v1078, %v1115
  %1117 = vmatmul.f32.gmra.mxu0 %v1059
  %v1118 = vpop.f32.mrf.mxu0
  %v1119 = vadd.f32 %v1078, %v1118
  %1120 = vdwg.mxu0
  %1121 = vst [vmem:[%s7] sm:$0xff] %v1098
  %1122 = vst [vmem:[%s7 + $0x8] sm:$0xff] %v1101
  %1123 = vst [vmem:[%s7 + $0x10] sm:$0xff] %v1104
  %1124 = vst [vmem:[%s7 + $0x18] sm:$0xff] %v1107
  %1125 = vst [vmem:[%s7 + $0x20] sm:$0xff] %v1110
  %1126 = vst [vmem:[%s7 + $0x28] sm:$0xff] %v1113
  %1127 = vst [vmem:[%s7 + $0x30] sm:$0xff] %v1116
  %1128 = vst [vmem:[%s7 + $0x38] sm:$0xff] %v1119
  // Predicated region
  $region34: #{b_tier_forward.1} parent=0 // pred_check
    _
  $region35: #{b_tier_forward.1} parent=0 // pred_check_branch
    %1130 = sbr.rel (0) target = $region37
  $region36: #{b_tier_forward.1} parent=0 // pred_region
    _
  $region37: #{b_tier_forward.1} parent=0 // pred_fallthru
    _
  // Predicated region
  $region38: #{b_tier_forward.1} parent=0 // pred_check
    _
  $region39: #{b_tier_forward.1} parent=0 // pred_check_branch
    %1132 = sbr.rel (0) target = $region41
  $region40: #{b_tier_forward.1} parent=0 // pred_region
    _
  $region41: #{b_tier_forward.1} parent=0 // pred_fallthru
    _
  // Predicated region
  $region42: #{b_tier_forward.1} parent=0 // pred_check
    _
  $region43: #{b_tier_forward.1} parent=0 // pred_check_branch
    %1134 = sbr.rel (0) target = $region45
  $region44: #{b_tier_forward.1} parent=0 // pred_region
    _
  $region45: #{b_tier_forward.1} parent=0 // pred_fallthru
    _
  // Predicated region
  $region46: #{b_tier_forward.1} parent=0 // pred_check
    _
  $region47: #{b_tier_forward.1} parent=0 // pred_check_branch
    %1136 = sbr.rel (0) target = $region49
  $region48: #{b_tier_forward.1} parent=0 // pred_region
    _
  $region49: #{b_tier_forward.1} parent=0 // pred_fallthru
    _

</llo_original>
